<compile_context>
chip_gen: v5e
topology: v5e:2x2
jax: 0.10.0
libtpu: 0.0.40
codegen_flags: <defaults>
</compile_context>

<pallas_src>
import math
import functools

import jax
import jax.numpy as jnp
from jax import lax
from jax.experimental import pallas as pl
from jax.experimental.pallas import tpu as pltpu

NEG_INF_FILL = -1000000000.0  # matches torch masked_fill(mask == 0, -1e9)


def _attend(q, k, v, mask_tile, o_ref, p_ref, *, scale, mm_dtype):
    # q: (TQ, D)   k: (Sk, D)   v: (Sk, Dv)   mask_tile: (TQ, Sk) int8 or None
    # Fold 1/sqrt(d_k) into q: TQ*D VPU multiplies instead of TQ*Sk on the scores.
    qs = (q.astype(jnp.float32) * scale).astype(mm_dtype)
    # Q @ K^T on the MXU (contraction on the trailing dim of both -> no transpose).
    s = lax.dot_general(qs, k.astype(mm_dtype), (((1,), (1,)), ((), ())),
                        preferred_element_type=jnp.float32)
    if mask_tile is not None:
        s = jnp.where(mask_tile == 0, NEG_INF_FILL, s)
    m = jnp.max(s, axis=-1, keepdims=True)
    e = jnp.exp(s - m)
    denom = jnp.sum(e, axis=-1, keepdims=True)
    # TQ exact reciprocals + broadcast multiply, instead of TQ*Sk per-element divides.
    p = e * pl.reciprocal(denom)
    o = lax.dot_general(p.astype(mm_dtype), v.astype(mm_dtype),
                        (((1,), (0,)), ((), ())),
                        preferred_element_type=jnp.float32)
    o_ref[0] = o.astype(o_ref.dtype)
    p_ref[0] = p.astype(p_ref.dtype)


def _attn_kernel(q_ref, k_ref, v_ref, o_ref, p_ref, *, scale, mm_dtype):
    _attend(q_ref[0], k_ref[0], v_ref[0], None, o_ref, p_ref,
            scale=scale, mm_dtype=mm_dtype)


def _attn_masked_kernel(q_ref, k_ref, v_ref, m_ref, o_ref, p_ref, *, scale, mm_dtype):
    _attend(q_ref[0], k_ref[0], v_ref[0], m_ref[0], o_ref, p_ref,
            scale=scale, mm_dtype=mm_dtype)


def _pick_block_q(sq, sk, dk, dv, p_itemsize, has_mask):
    """Largest q-row tile that fits a conservative VMEM budget (ok on v7x's 64 MiB)."""
    if sq <= 256:
        return sq  # single tile, full-extent block (satisfies layout rules)
    budget = 24 * 1024 * 1024
    kv = 2 * sk * (dk + dv) * 4          # double-buffered pinned K/V (f32 upper bound)
    for bq in (256, 128, 64):            # 256 fills the 2x256 MXU on v6e/v7x
        qb = 2 * bq * dk * 4             # double-buffered Q tile
        ob = 2 * bq * dv * 4             # double-buffered O tile
        pb = 2 * bq * sk * p_itemsize    # double-buffered p_attn tile
        mb = 2 * bq * sk if has_mask else 0   # int8 mask tile
        tmp = 3 * bq * sk * 4            # f32 score / exp intermediates
        if kv + qb + ob + pb + mb + tmp <= budget:
            return bq
    return 64


def attn_forward(Q, K, V, mask=None, dropout=None, *, matmul_dtype=None, p_dtype=None):
    """Scaled dot-product attention (PyTorch `attn.forward` semantics).

    Q: (..., Sq, d_k), K: (..., Sk, d_k), V: (..., Sk, d_v)
    mask: broadcastable to (..., Sq, Sk); positions where mask == 0 are filled with -1e9.
    matmul_dtype: optional MXU operand dtype (e.g. jnp.bfloat16) with f32 accumulation.
    p_dtype: optional output dtype for p_attn (e.g. jnp.bfloat16) to halve its HBM write.
    Returns (output (..., Sq, d_v), p_attn (..., Sq, Sk)).
    """
    if dropout is not None:
        # TODO(synk): dropout on p_attn not implemented (reference default is None);
        # would use pltpu.prng_seed + pltpu.stateful_bernoulli inside the kernel.
        raise NotImplementedError("dropout is not supported in the Pallas kernel")

    *lead, Sq, Dq = Q.shape
    Sk, Dk = K.shape[-2], K.shape[-1]
    Dv = V.shape[-1]

    bh = 1
    for s in lead:
        bh *= int(s)

    q3 = Q.reshape(bh, Sq, Dq)
    k3 = K.reshape(bh, Sk, Dk)
    v3 = V.reshape(bh, Sk, Dv)

    mm_dtype = jnp.dtype(matmul_dtype) if matmul_dtype is not None else jnp.dtype(Q.dtype)
    p_out_dtype = jnp.dtype(p_dtype) if p_dtype is not None else jnp.dtype(Q.dtype)
    scale = 1.0 / math.sqrt(Dk)

    block_q = _pick_block_q(Sq, Sk, Dk, Dv, p_out_dtype.itemsize, mask is not None)
    n_q = pl.cdiv(Sq, block_q)
    sq_pad = n_q * block_q
    if sq_pad != Sq:
        # Pad q rows with zeros; padded rows produce harmless uniform-softmax rows
        # that are sliced off below.
        q3 = jnp.pad(q3, ((0, 0), (0, sq_pad - Sq), (0, 0)))

    grid = (bh, n_q)

    q_spec = pl.BlockSpec((1, block_q, Dq), lambda b, i: (b, i, 0))
    k_spec = pl.BlockSpec((1, Sk, Dk), lambda b, i: (b, 0, 0))   # pinned per head
    v_spec = pl.BlockSpec((1, Sk, Dv), lambda b, i: (b, 0, 0))   # pinned per head
    o_spec = pl.BlockSpec((1, block_q, Dv), lambda b, i: (b, i, 0))
    p_spec = pl.BlockSpec((1, block_q, Sk), lambda b, i: (b, i, 0))

    out_shapes = (jax.ShapeDtypeStruct((bh, sq_pad, Dv), Q.dtype),
                  jax.ShapeDtypeStruct((bh, sq_pad, Sk), p_out_dtype))

    compiler_params = pltpu.CompilerParams(
        dimension_semantics=("parallel", "parallel"),
        vmem_limit_bytes=48 * 1024 * 1024)

    if mask is None:
        kernel = functools.partial(_attn_kernel, scale=scale, mm_dtype=mm_dtype)
        in_specs = [q_spec, k_spec, v_spec]
        args = (q3, k3, v3)
    else:
        mask = jnp.asarray(mask)
        extra = Q.ndim - mask.ndim
        if extra > 0:
            mask = mask.reshape((1,) * extra + mask.shape)
        mask = jnp.broadcast_to(mask, mask.shape[:-2] + (Sq, Sk))
        if all(int(d) == 1 for d in mask.shape[:-2]):
            # Batch/head-invariant mask (e.g. (1,1,Sq,Sk) causal): keep ONE copy in HBM
            # and express the broadcast in the index_map — no bh-way duplication.
            mask3 = mask.reshape(1, Sq, Sk)
            m_idx = lambda b, i: (0, i, 0)
        else:
            mask3 = jnp.broadcast_to(mask, (*lead, Sq, Sk)).reshape(bh, Sq, Sk)
            m_idx = lambda b, i: (b, i, 0)
        # int8 mask: 4x fewer DMA bytes than int32.
        mask3 = (mask3 != 0).astype(jnp.int8)
        if sq_pad != Sq:
            mask3 = jnp.pad(mask3, ((0, 0), (0, sq_pad - Sq), (0, 0)), constant_values=1)
        m_spec = pl.BlockSpec((1, block_q, Sk), m_idx)
        # TODO(synk): for structured (e.g. causal) masks, the mask could be generated
        # in-kernel with broadcasted_iota instead of streamed from HBM at all.
        kernel = functools.partial(_attn_masked_kernel, scale=scale, mm_dtype=mm_dtype)
        in_specs = [q_spec, k_spec, v_spec, m_spec]
        args = (q3, k3, v3, mask3)

    out, p = pl.pallas_call(
        kernel,
        out_shape=out_shapes,
        grid_spec=pltpu.PrefetchScalarGridSpec(
            num_scalar_prefetch=0,
            grid=grid,
            in_specs=in_specs,
            out_specs=[o_spec, p_spec]),
        compiler_params=compiler_params,
    )(*args)

    if sq_pad != Sq:
        out = out[:, :Sq]
        p = p[:, :Sq]
    return out.reshape(*lead, Sq, Dv), p.reshape(*lead, Sq, Sk)


def attn_reference(Q, K, V, mask=None):
    d_k = K.shape[-1]
    scores = jnp.matmul(Q, jnp.swapaxes(K, -1, -2)) / math.sqrt(d_k)
    if mask is not None:
        scores = jnp.where(mask == 0, NEG_INF_FILL, scores)
    p = jax.nn.softmax(scores, axis=-1)
    return jnp.matmul(p, V), p


if __name__ == "__main__":
    batch, heads, seq, d_k = 2, 4, 16, 32

    key = jax.random.PRNGKey(0)
    kq, kk, kv = jax.random.split(key, 3)
    Q = jax.random.normal(kq, (batch, heads, seq, d_k), dtype=jnp.float32)
    K = jax.random.normal(kk, (batch, heads, seq, d_k), dtype=jnp.float32)
    V = jax.random.normal(kv, (batch, heads, seq, d_k), dtype=jnp.float32)

    # 1) Unmasked path.
    out, p = jax.block_until_ready(attn_forward(Q, K, V))
    out_ref, p_ref = attn_reference(Q, K, V)
    assert out.shape == (batch, heads, seq, d_k)
    assert p.shape == (batch, heads, seq, seq)
    assert jnp.allclose(out, out_ref, atol=1e-5, rtol=1e-5)
    assert jnp.allclose(p, p_ref, atol=1e-5, rtol=1e-5)

    # 2) Masked path (PyTorch-style broadcastable (1, 1, Sq, Sk) causal mask —
    #    exercises the deduplicated single-copy int8 mask stream).
    causal = jnp.tril(jnp.ones((seq, seq), dtype=jnp.int32))[None, None]
    out_m, p_m = jax.block_until_ready(attn_forward(Q, K, V, mask=causal))
    out_m_ref, p_m_ref = attn_reference(Q, K, V, mask=causal)
    assert jnp.allclose(out_m, out_m_ref, atol=1e-5, rtol=1e-5)
    assert jnp.allclose(p_m, p_m_ref, atol=1e-5, rtol=1e-5)

    # 3) Tiled + padded q path (Sq = 384 > 256-row tile, not a multiple of it).
    b2, h2, s2, d2 = 1, 2, 384, 32
    k2q, k2k, k2v = jax.random.split(jax.random.PRNGKey(1), 3)
    Q2 = jax.random.normal(k2q, (b2, h2, s2, d2), dtype=jnp.float32)
    K2 = jax.random.normal(k2k, (b2, h2, s2, d2), dtype=jnp.float32)
    V2 = jax.random.normal(k2v, (b2, h2, s2, d2), dtype=jnp.float32)
    causal2 = jnp.tril(jnp.ones((s2, s2), dtype=jnp.int32))[None, None]
    out2, p2 = jax.block_until_ready(attn_forward(Q2, K2, V2, mask=causal2))
    out2_ref, p2_ref = attn_reference(Q2, K2, V2, mask=causal2)
    assert jnp.allclose(out2, out2_ref, atol=1e-4, rtol=1e-4)
    assert jnp.allclose(p2, p2_ref, atol=1e-4, rtol=1e-4)

    # 4) Optional throughput mode: bf16 MXU operands with f32 accumulation
    #    (deliberate precision trade-off; off by default, so looser tolerance).
    out_b, p_b = jax.block_until_ready(
        attn_forward(Q, K, V, mask=causal, matmul_dtype=jnp.bfloat16))
    assert jnp.allclose(out_b, out_m_ref, atol=5e-2, rtol=5e-2)
    assert jnp.allclose(p_b, p_m_ref, atol=5e-2, rtol=5e-2)

    print("KERNEL_OK")
</pallas_src>

<mosaic_0001>
module attributes {stable_mosaic.version = 11 : i64} {
  func.func @_attn_kernel(%arg0: i32, %arg1: i32, %arg2: memref<1x16x32xf32, #tpu.memory_space<vmem>>, %arg3: memref<1x16x32xf32, #tpu.memory_space<vmem>>, %arg4: memref<1x16x32xf32, #tpu.memory_space<vmem>>, %arg5: memref<1x16x32xf32, #tpu.memory_space<vmem>>, %arg6: memref<1x16x16xf32, #tpu.memory_space<vmem>>) attributes {dimension_semantics = [#tpu.dimension_semantics<parallel>, #tpu.dimension_semantics<parallel>], iteration_bounds = array<i64: 8, 1>, scalar_prefetch = 0 : i64, scratch_operands = 0 : i64, tpu.core_type = #tpu.core_type<tc>, window_params = [{transform_indices = @transform_0, window_bounds = array<i64: 1, 16, 32>}, {transform_indices = @transform_1, window_bounds = array<i64: 1, 16, 32>}, {transform_indices = @transform_2, window_bounds = array<i64: 1, 16, 32>}, {transform_indices = @transform_3, window_bounds = array<i64: 1, 16, 32>}, {transform_indices = @transform_4, window_bounds = array<i64: 1, 16, 16>}]} {
    %c0 = arith.constant 0 : index
    %c0_0 = arith.constant 0 : index
    %c0_1 = arith.constant 0 : index
    %0 = vector.load %arg2[%c0, %c0_0, %c0_1] : memref<1x16x32xf32, #tpu.memory_space<vmem>>, vector<1x16x32xf32>
    %1 = vector.shape_cast %0 : vector<1x16x32xf32> to vector<16x32xf32>
    %c0_2 = arith.constant 0 : index
    %c0_3 = arith.constant 0 : index
    %c0_4 = arith.constant 0 : index
    %2 = vector.load %arg3[%c0_2, %c0_3, %c0_4] : memref<1x16x32xf32, #tpu.memory_space<vmem>>, vector<1x16x32xf32>
    %3 = vector.shape_cast %2 : vector<1x16x32xf32> to vector<16x32xf32>
    %c0_5 = arith.constant 0 : index
    %c0_6 = arith.constant 0 : index
    %c0_7 = arith.constant 0 : index
    %4 = vector.load %arg4[%c0_5, %c0_6, %c0_7] : memref<1x16x32xf32, #tpu.memory_space<vmem>>, vector<1x16x32xf32>
    %5 = vector.shape_cast %4 : vector<1x16x32xf32> to vector<16x32xf32>
    %cst = arith.constant 0.176776692 : f32
    %6 = vector.broadcast %cst : f32 to vector<16x32xf32>
    %7 = arith.mulf %1, %6 : vector<16x32xf32>
    %cst_8 = arith.constant dense<0.000000e+00> : vector<16x16xf32>
    %8 = tpu.matmul %7, %3, %cst_8 {dimension_numbers = #tpu.dot_dimension_numbers<[1], [1], [0], [0], [0, 0, 1, 0], [], []>} : vector<16x32xf32>, vector<16x32xf32>, vector<16x16xf32> -> vector<16x16xf32>
    %cst_9 = arith.constant dense<0xFF800000> : vector<16xf32>
    %9 = vector.multi_reduction <maximumf>, %8, %cst_9 [1] : vector<16x16xf32> to vector<16xf32>
    %10 = vector.shape_cast %9 : vector<16xf32> to vector<16x1xf32>
    %11 = vector.broadcast %10 : vector<16x1xf32> to vector<16x16xf32>
    %12 = arith.subf %8, %11 : vector<16x16xf32>
    %13 = math.exp %12 : vector<16x16xf32>
    %cst_10 = arith.constant dense<0.000000e+00> : vector<16xf32>
    %14 = vector.multi_reduction <add>, %13, %cst_10 [1] : vector<16x16xf32> to vector<16xf32>
    %15 = vector.shape_cast %14 : vector<16xf32> to vector<16x1xf32>
    %16 = tpu.reciprocal %15 : vector<16x1xf32> -> vector<16x1xf32>
    %17 = vector.broadcast %16 : vector<16x1xf32> to vector<16x16xf32>
    %18 = arith.mulf %13, %17 : vector<16x16xf32>
    %cst_11 = arith.constant dense<0.000000e+00> : vector<16x32xf32>
    %19 = tpu.matmul %18, %5, %cst_11 {dimension_numbers = #tpu.dot_dimension_numbers<[1], [0], [0], [1], [0, 0, 1, 1], [], []>} : vector<16x16xf32>, vector<16x32xf32>, vector<16x32xf32> -> vector<16x32xf32>
    %c0_12 = arith.constant 0 : index
    %c0_13 = arith.constant 0 : index
    %c0_14 = arith.constant 0 : index
    %20 = vector.load %arg5[%c0_12, %c0_13, %c0_14] : memref<1x16x32xf32, #tpu.memory_space<vmem>>, vector<1x16x32xf32>
    %21 = vector.shape_cast %20 : vector<1x16x32xf32> to vector<16x32xf32>
    %22 = vector.shape_cast %19 : vector<16x32xf32> to vector<1x16x32xf32>
    tpu.vector_store %arg5[%c0_12, %c0_13, %c0_14], %22 {strides = array<i32>} : memref<1x16x32xf32, #tpu.memory_space<vmem>>, vector<1x16x32xf32>,
    %c0_15 = arith.constant 0 : index
    %c0_16 = arith.constant 0 : index
    %c0_17 = arith.constant 0 : index
    %23 = vector.load %arg6[%c0_15, %c0_16, %c0_17] : memref<1x16x16xf32, #tpu.memory_space<vmem>>, vector<1x16x16xf32>
    %24 = vector.shape_cast %23 : vector<1x16x16xf32> to vector<16x16xf32>
    %25 = vector.shape_cast %18 : vector<16x16xf32> to vector<1x16x16xf32>
    tpu.vector_store %arg6[%c0_15, %c0_16, %c0_17], %25 {strides = array<i32>} : memref<1x16x16xf32, #tpu.memory_space<vmem>>, vector<1x16x16xf32>,
    return
  }
  func.func @transform_0(%arg0: i32, %arg1: i32) -> (i32, i32, i32) {
    %c0_i32 = arith.constant 0 : i32
    %c0_i32_0 = arith.constant 0 : i32
    return %arg0, %arg1, %c0_i32 : i32, i32, i32
  }
  func.func @transform_1(%arg0: i32, %arg1: i32) -> (i32, i32, i32) {
    %c0_i32 = arith.constant 0 : i32
    %c0_i32_0 = arith.constant 0 : i32
    %c0_i32_1 = arith.constant 0 : i32
    return %arg0, %c0_i32, %c0_i32_0 : i32, i32, i32
  }
  func.func @transform_2(%arg0: i32, %arg1: i32) -> (i32, i32, i32) {
    %c0_i32 = arith.constant 0 : i32
    %c0_i32_0 = arith.constant 0 : i32
    %c0_i32_1 = arith.constant 0 : i32
    return %arg0, %c0_i32, %c0_i32_0 : i32, i32, i32
  }
  func.func @transform_3(%arg0: i32, %arg1: i32) -> (i32, i32, i32) {
    %c0_i32 = arith.constant 0 : i32
    %c0_i32_0 = arith.constant 0 : i32
    return %arg0, %arg1, %c0_i32 : i32, i32, i32
  }
  func.func @transform_4(%arg0: i32, %arg1: i32) -> (i32, i32, i32) {
    %c0_i32 = arith.constant 0 : i32
    %c0_i32_0 = arith.constant 0 : i32
    return %arg0, %arg1, %c0_i32 : i32, i32, i32
  }
}

</mosaic_0001>

<llo_original>
// kernel: tpu_custom_call.1
$region0: #{tpu_custom_call.1}
  #allocation0 [shape = 'u32[]', space=smem, size = 0x4, offset = 0x4, fixed_abs, tag = 'smem constant byte address 0x4 - core index']
  #allocation1 [shape = 'u32[72,128]{1,0:T(1,128)}', space=vmem, size = 0x9000, scoped, tag = 'internal scratch']
  %s0 = inlined_call_operand.hbm [shape: f32[8,16,32], index: 0, kind: input, shape index: {}]
  %s1 = inlined_call_operand.hbm [shape: f32[8,16,32], index: 1, kind: input, shape index: {}]
  %s2 = inlined_call_operand.hbm [shape: f32[8,16,32], index: 2, kind: input, shape index: {}]
  %s3 = inlined_call_operand.hbm [shape: f32[8,16,32], index: 3, kind: output, shape index: {0}]
  %s4 = inlined_call_operand.hbm [shape: f32[8,16,16], index: 4, kind: output, shape index: {1}]
  %5 = xla_tuple %s3, %s4
  %s6 = sld [smem:[#allocation0]]
  $region65: #{tpu_custom_call.1} parent=0
    _
  %s8 = ssub.s32 1, %s6
  %s9 = scalar_select 0, %s8, %s6
  $region1: #{tpu_custom_call.1} parent=0
    #allocation2 [shape = 'u8[16384]{0}', space=vmem, size = 0x4000, scoped, tag = 'input window, operand 0']
    #allocation3 [shape = 's32[2]{0}', space=sflag, size = 0x8, scoped, tag = 'scoped memory for tpu_custom_call.1']
    #allocation4 [shape = 's32[2]{0}', space=sflag, size = 0x8, scoped, tag = 'scoped memory for tpu_custom_call.1']
    #allocation5 [shape = 'u8[16384]{0}', space=vmem, size = 0x4000, scoped, tag = 'input window, operand 1']
    #allocation6 [shape = 's32[2]{0}', space=sflag, size = 0x8, scoped, tag = 'scoped memory for tpu_custom_call.1']
    #allocation7 [shape = 'u8[16384]{0}', space=vmem, size = 0x4000, scoped, tag = 'input window, operand 2']
    #allocation8 [shape = 'u8[16384]{0}', space=vmem, size = 0x4000, scoped, tag = 'output window, operand 0']
    #allocation9 [shape = 'u8[16384]{0}', space=vmem, size = 0x4000, scoped, tag = 'output window, operand 1']
    #allocation10 [shape = 's32[2]{0}', space=sflag, size = 0x8, scoped, tag = 'scoped memory for tpu_custom_call.1']
    %10 = vsyncpa [#allocation3], 0
    %s11 = scalar_lea.sflag [#allocation3], 1
    %12 = vsyncpa %s11, 0
    %13 = vsyncpa [#allocation6], 0
    %s14 = scalar_lea.sflag [#allocation6], 1
    %15 = vsyncpa %s14, 0
    %16 = vsyncpa [#allocation4], 0
    %s17 = scalar_lea.sflag [#allocation4], 1
    %18 = vsyncpa %s17, 0
    %19 = vsyncpa [#allocation10], 0
    %s20 = scalar_lea.sflag [#allocation10], 1
    %21 = vsyncpa %s20, 0
    loop: start=0, step=1, limit=10
    $region2: #{tpu_custom_call.1} parent=1 // loop_pre_header
      _
    $region3: #{tpu_custom_call.1} parent=1 // loop_header
      %s23 = sphi 0, %s27
      %p24 = scmp.ge.s32.totalorder %s23, 10
      %s30 = sphi 0, %s42
      %s31 = sphi 0, %s38
      %s32 = sphi 0, %s30
      %s33 = sphi 0, %s31
      %s34 = sphi 0, %s32
      %s35 = sphi 0, %s33
      %s47 = sphi 0, %s49
      %s50 = sphi 0, %s47
      %s51 = sphi 0, %s50
      %s67 = sphi 0, %s51
      %s73 = sphi 0, %s75
      %s76 = sphi 0, %s73
      %s77 = sphi 0, %s76
      %s93 = sphi 0, %s77
      %s99 = sphi 0, %s101
      %s102 = sphi 0, %s99
      %s103 = sphi 0, %s102
      %s119 = sphi 0, %s103
      %s127 = sphi 0, %s129
      %s130 = sphi 0, %s127
      %s131 = sphi 0, %s130
      %s147 = sphi 0, %s131
      %s155 = sphi 0, %s157
      %s158 = sphi 0, %s155
      %s159 = sphi 0, %s158
      %s175 = sphi 0, %s159
    $region4: #{tpu_custom_call.1} parent=1 // loop_header_branch
      %26 = sbr.rel (%p24) target = $region8
    $region5: #{tpu_custom_call.1} parent=1 // loop_body
      %s28 = ssub.s32 %s23, 1
      %s29 = ssub.s32 %s23, 2
      %s36 = sadd.s32 1, %s31
      %p37 = scmp.ge.s32.totalorder %s36, 1
      %s38 = scalar_select %p37, 0, %s36
      %s39 = sadd.s32 1, %s30
      %s40 = scalar_select %p37, %s39, %s30
      %p41 = scmp.ge.s32.totalorder %s40, 8
      %s42 = scalar_select %p41, 0, %s40
      %s43 = ssub.s32 %s30, %s42
      %s44 = ssub.s32 %s31, %s38
      %s45 = sor.u32 %s43, %s44
      %p46 = scmp.eq.s32.totalorder %s45, 0
      %s48 = sadd.s32 %s47, 1
      %s49 = scalar_select %p46, %s47, %s48
      %p52 = pneg %p46
      %p53 = scmp.eq.s32.totalorder %s23, 7
      %p54 = por %p52, %p53
      %p55 = scmp.ne.s32.totalorder %s47, %s50
      %p56 = scmp.eq.s32.totalorder %s23, 0
      %p57 = por %p55, %p56
      %p58 = scmp.ne.s32.totalorder %s47, %s50
      %p59 = scmp.eq.s32.totalorder %s28, 7
      %p60 = por %p58, %p59
      %p61 = scmp.ne.s32.totalorder %s50, %s51
      %p62 = scmp.eq.s32.totalorder %s28, 0
      %p63 = por %p61, %p62
      %p64 = scmp.ne.s32.totalorder %s50, %s51
      %p65 = scmp.eq.s32.totalorder %s29, 7
      %p66 = por %p64, %p65
      %p68 = scmp.ne.s32.totalorder %s51, %s67
      %p69 = scmp.eq.s32.totalorder %s29, 0
      %p70 = por %p68, %p69
      %s71 = ssub.s32 %s30, %s42
      %p72 = scmp.eq.s32.totalorder %s71, 0
      %s74 = sadd.s32 %s73, 1
      %s75 = scalar_select %p72, %s73, %s74
      %p78 = pneg %p72
      %p79 = scmp.eq.s32.totalorder %s23, 7
      %p80 = por %p78, %p79
      %p81 = scmp.ne.s32.totalorder %s73, %s76
      %p82 = scmp.eq.s32.totalorder %s23, 0
      %p83 = por %p81, %p82
      %p84 = scmp.ne.s32.totalorder %s73, %s76
      %p85 = scmp.eq.s32.totalorder %s28, 7
      %p86 = por %p84, %p85
      %p87 = scmp.ne.s32.totalorder %s76, %s77
      %p88 = scmp.eq.s32.totalorder %s28, 0
      %p89 = por %p87, %p88
      %p90 = scmp.ne.s32.totalorder %s76, %s77
      %p91 = scmp.eq.s32.totalorder %s29, 7
      %p92 = por %p90, %p91
      %p94 = scmp.ne.s32.totalorder %s77, %s93
      %p95 = scmp.eq.s32.totalorder %s29, 0
      %p96 = por %p94, %p95
      %s97 = ssub.s32 %s30, %s42
      %p98 = scmp.eq.s32.totalorder %s97, 0
      %s100 = sadd.s32 %s99, 1
      %s101 = scalar_select %p98, %s99, %s100
      %p104 = pneg %p98
      %p105 = scmp.eq.s32.totalorder %s23, 7
      %p106 = por %p104, %p105
      %p107 = scmp.ne.s32.totalorder %s99, %s102
      %p108 = scmp.eq.s32.totalorder %s23, 0
      %p109 = por %p107, %p108
      %p110 = scmp.ne.s32.totalorder %s99, %s102
      %p111 = scmp.eq.s32.totalorder %s28, 7
      %p112 = por %p110, %p111
      %p113 = scmp.ne.s32.totalorder %s102, %s103
      %p114 = scmp.eq.s32.totalorder %s28, 0
      %p115 = por %p113, %p114
      %p116 = scmp.ne.s32.totalorder %s102, %s103
      %p117 = scmp.eq.s32.totalorder %s29, 7
      %p118 = por %p116, %p117
      %p120 = scmp.ne.s32.totalorder %s103, %s119
      %p121 = scmp.eq.s32.totalorder %s29, 0
      %p122 = por %p120, %p121
      %s123 = ssub.s32 %s30, %s42
      %s124 = ssub.s32 %s31, %s38
      %s125 = sor.u32 %s123, %s124
      %p126 = scmp.eq.s32.totalorder %s125, 0
      %s128 = sadd.s32 %s127, 1
      %s129 = scalar_select %p126, %s127, %s128
      %p132 = pneg %p126
      %p133 = scmp.eq.s32.totalorder %s23, 7
      %p134 = por %p132, %p133
      %p135 = scmp.ne.s32.totalorder %s127, %s130
      %p136 = scmp.eq.s32.totalorder %s23, 0
      %p137 = por %p135, %p136
      %p138 = scmp.ne.s32.totalorder %s127, %s130
      %p139 = scmp.eq.s32.totalorder %s28, 7
      %p140 = por %p138, %p139
      %p141 = scmp.ne.s32.totalorder %s130, %s131
      %p142 = scmp.eq.s32.totalorder %s28, 0
      %p143 = por %p141, %p142
      %p144 = scmp.ne.s32.totalorder %s130, %s131
      %p145 = scmp.eq.s32.totalorder %s29, 7
      %p146 = por %p144, %p145
      %p148 = scmp.ne.s32.totalorder %s131, %s147
      %p149 = scmp.eq.s32.totalorder %s29, 0
      %p150 = por %p148, %p149
      %s151 = ssub.s32 %s30, %s42
      %s152 = ssub.s32 %s31, %s38
      %s153 = sor.u32 %s151, %s152
      %p154 = scmp.eq.s32.totalorder %s153, 0
      %s156 = sadd.s32 %s155, 1
      %s157 = scalar_select %p154, %s155, %s156
      %p160 = pneg %p154
      %p161 = scmp.eq.s32.totalorder %s23, 7
      %p162 = por %p160, %p161
      %p163 = scmp.ne.s32.totalorder %s155, %s158
      %p164 = scmp.eq.s32.totalorder %s23, 0
      %p165 = por %p163, %p164
      %p166 = scmp.ne.s32.totalorder %s155, %s158
      %p167 = scmp.eq.s32.totalorder %s28, 7
      %p168 = por %p166, %p167
      %p169 = scmp.ne.s32.totalorder %s158, %s159
      %p170 = scmp.eq.s32.totalorder %s28, 0
      %p171 = por %p169, %p170
      %p172 = scmp.ne.s32.totalorder %s158, %s159
      %p173 = scmp.eq.s32.totalorder %s29, 7
      %p174 = por %p172, %p173
      %p176 = scmp.ne.s32.totalorder %s159, %s175
      %p177 = scmp.eq.s32.totalorder %s29, 0
      %p178 = por %p176, %p177
      %p179 = scmp.le.s32.totalorder 1, %s23
      %p180 = scmp.lt.s32.totalorder %s23, 9
      %p181 = pnand %p179, %p180
      %p182 = pneg %p181
      // Predicated region
      $region9: #{tpu_custom_call.1} parent=5 // pred_check
        _
      $region10: #{tpu_custom_call.1} parent=5 // pred_check_branch
        %184 = sbr.rel (%p181) target = $region12
      $region11: #{tpu_custom_call.1} parent=5 // pred_region
        %s185 = ssub.s32 %s23, 1
      $region12: #{tpu_custom_call.1} parent=5 // pred_fallthru
        _
      %p186 = scmp.lt.s32.totalorder %s23, 8
      // Predicated region
      $region13: #{tpu_custom_call.1} parent=5 // pred_check
        %p187 = pneg %p186
      $region14: #{tpu_custom_call.1} parent=5 // pred_check_branch
        %189 = sbr.rel (%p187) target = $region16
      $region15: #{tpu_custom_call.1} parent=5 // pred_region
        // Predicated region
        $region17: #{tpu_custom_call.1} parent=15 // pred_check
          %p190 = pneg %p57
        $region18: #{tpu_custom_call.1} parent=15 // pred_check_branch
          %192 = sbr.rel (%p190) target = $region20
        $region19: #{tpu_custom_call.1} parent=15 // pred_region
          %s193 = sand.u32 %s47, 1
          %s194 = scalar_lea.sflag [#allocation3], %s193
          %s195 = sand.u32 %s47, 1
          %s196 = smul.addr %s195, 16
          %s197 = scalar_lea.vmem [#allocation2], %s196
          %s198 = smul.u32 2, %s31
          %200 = vsyncadd %s194, 0
          %s201 = smul.addr %s30, 2
          %s202 = sadd.s32 %s198, %s201
          %s203 = smul.addr %s202, 8
          %s204 = scalar_lea.hbm %s0, %s203
          %s205 = sshll.u32 %s204, 4
          %s206 = int_to_ptr.hbm [resolvable:$true] %s205
          %s207 = sshll.u32 %s197, 4
          %s208 = int_to_ptr.vmem [resolvable:$true] %s207
          %213 = dma.hbm_to_vmem [thread:$0]  %s206, 256, %s208, %s194, 128, 128, 8
        $region20: #{tpu_custom_call.1} parent=15 // pred_fallthru
          _
        // Predicated region
        $region21: #{tpu_custom_call.1} parent=15 // pred_check
          %p214 = pneg %p83
        $region22: #{tpu_custom_call.1} parent=15 // pred_check_branch
          %216 = sbr.rel (%p214) target = $region24
        $region23: #{tpu_custom_call.1} parent=15 // pred_region
          %s217 = sand.u32 %s23, 1
          %s218 = scalar_lea.sflag [#allocation6], %s217
          %s219 = sand.u32 %s73, 1
          %s220 = smul.addr %s219, 16
          %s221 = scalar_lea.vmem [#allocation5], %s220
          %223 = vsyncadd %s218, 0
          %s224 = smul.addr %s30, 2
          %s225 = smul.addr %s224, 8
          %s226 = scalar_lea.hbm %s1, %s225
          %s227 = sshll.u32 %s226, 4
          %s228 = int_to_ptr.hbm [resolvable:$true] %s227
          %s229 = sshll.u32 %s221, 4
          %s230 = int_to_ptr.vmem [resolvable:$true] %s229
          %235 = dma.hbm_to_vmem [thread:$0]  %s228, 256, %s230, %s218, 128, 128, 8
        $region24: #{tpu_custom_call.1} parent=15 // pred_fallthru
          _
        // Predicated region
        $region25: #{tpu_custom_call.1} parent=15 // pred_check
          %p236 = pneg %p109
        $region26: #{tpu_custom_call.1} parent=15 // pred_check_branch
          %238 = sbr.rel (%p236) target = $region28
        $region27: #{tpu_custom_call.1} parent=15 // pred_region
          %s239 = sand.u32 %s23, 1
          %s240 = scalar_lea.sflag [#allocation6], %s239
          %s241 = sand.u32 %s99, 1
          %s242 = smul.addr %s241, 16
          %s243 = scalar_lea.vmem [#allocation7], %s242
          %245 = vsyncadd %s240, 0
          %s246 = smul.addr %s30, 2
          %s247 = smul.addr %s246, 8
          %s248 = scalar_lea.hbm %s2, %s247
          %s249 = sshll.u32 %s248, 4
          %s250 = int_to_ptr.hbm [resolvable:$true] %s249
          %s251 = sshll.u32 %s243, 4
          %s252 = int_to_ptr.vmem [resolvable:$true] %s251
          %257 = dma.hbm_to_vmem [thread:$0]  %s250, 256, %s252, %s240, 128, 128, 8
        $region28: #{tpu_custom_call.1} parent=15 // pred_fallthru
          _
      $region16: #{tpu_custom_call.1} parent=5 // pred_fallthru
        _
      %p258 = scmp.le.s32.totalorder 1, %s23
      %p259 = scmp.lt.s32.totalorder %s23, 9
      %p260 = pnand %p258, %p259
      %p261 = pneg %p260
      // Predicated region
      $region29: #{tpu_custom_call.1} parent=5 // pred_check
        _
      $region30: #{tpu_custom_call.1} parent=5 // pred_check_branch
        %263 = sbr.rel (%p260) target = $region32
      $region31: #{tpu_custom_call.1} parent=5 // pred_region
        %s264 = ssub.s32 %s23, 1
        %s265 = sand.u32 %s50, 1
        %s266 = scalar_lea.sflag [#allocation3], %s265
        %s267 = sand.u32 %s50, 1
        %s268 = smul.addr %s267, 16
        %s269 = scalar_lea.vmem [#allocation2], %s268
        // Predicated region
        $region33: #{tpu_custom_call.1} parent=31 // pred_check
          %p270 = pneg %p63
        $region34: #{tpu_custom_call.1} parent=31 // pred_check_branch
          %272 = sbr.rel (%p270) target = $region36
        $region35: #{tpu_custom_call.1} parent=31 // pred_region
          %274 = dma.done %s266, 256
        $region36: #{tpu_custom_call.1} parent=31 // pred_fallthru
          _
        %s275 = sand.u32 %s28, 1
        %s276 = scalar_lea.sflag [#allocation6], %s275
        %s277 = sand.u32 %s76, 1
        %s278 = smul.addr %s277, 16
        %s279 = scalar_lea.vmem [#allocation5], %s278
        // Predicated region
        $region37: #{tpu_custom_call.1} parent=31 // pred_check
          %p280 = pneg %p89
        $region38: #{tpu_custom_call.1} parent=31 // pred_check_branch
          %282 = sbr.rel (%p280) target = $region40
        $region39: #{tpu_custom_call.1} parent=31 // pred_region
          %284 = dma.done %s276, 256
        $region40: #{tpu_custom_call.1} parent=31 // pred_fallthru
          _
        %s285 = sand.u32 %s28, 1
        %s286 = scalar_lea.sflag [#allocation6], %s285
        %s287 = sand.u32 %s102, 1
        %s288 = smul.addr %s287, 16
        %s289 = scalar_lea.vmem [#allocation7], %s288
        // Predicated region
        $region41: #{tpu_custom_call.1} parent=31 // pred_check
          %p290 = pneg %p115
        $region42: #{tpu_custom_call.1} parent=31 // pred_check_branch
          %292 = sbr.rel (%p290) target = $region44
        $region43: #{tpu_custom_call.1} parent=31 // pred_region
          %294 = dma.done %s286, 256
        $region44: #{tpu_custom_call.1} parent=31 // pred_fallthru
          _
        %s295 = sand.u32 %s50, 1
        %s296 = scalar_lea.sflag [#allocation3], %s295
        %s297 = sand.u32 %s50, 1
        %s298 = smul.addr %s297, 16
        %s299 = scalar_lea.vmem [#allocation2], %s298
        %p300 = pneg %p63
        %p301 = pneg %p60
        %s302 = sand.u32 %s28, 1
        %s303 = scalar_lea.sflag [#allocation6], %s302
        %s304 = sand.u32 %s76, 1
        %s305 = smul.addr %s304, 16
        %s306 = scalar_lea.vmem [#allocation5], %s305
        %p307 = pneg %p89
        %p308 = pneg %p86
        %s309 = sand.u32 %s28, 1
        %s310 = scalar_lea.sflag [#allocation6], %s309
        %s311 = sand.u32 %s102, 1
        %s312 = smul.addr %s311, 16
        %s313 = scalar_lea.vmem [#allocation7], %s312
        %p314 = pneg %p115
        %p315 = pneg %p112
        %p316 = pneg %p143
        %p317 = pneg %p140
        %s318 = sand.u32 %s130, 1
        %s319 = scalar_lea.sflag [#allocation4], %s318
        %s320 = sand.u32 %s130, 1
        %s321 = smul.addr %s320, 16
        %s322 = scalar_lea.vmem [#allocation8], %s321
        %p323 = pneg %p171
        %p324 = pneg %p168
        %s325 = sand.u32 %s158, 1
        %s326 = scalar_lea.sflag [#allocation10], %s325
        %s327 = sand.u32 %s158, 1
        %s328 = smul.addr %s327, 16
        %s329 = scalar_lea.vmem [#allocation9], %s328
        %s330 = smul.u32 2, %s33
        %s331 = smul.u32 2, %s33
        %s332 = smul.u32 2, %s33
        %v333 = vld [vmem:[%s269] sm:$0xff]
        %v334 = vld [vmem:[%s269 + $0x8] sm:$0xff]
        %v335 = vld [vmem:[%s279] sm:$0xff]
        %v336 = vld [vmem:[%s279 + $0x8] sm:$0xff]
        %v337 = vld [vmem:[%s289] sm:$0xff]
        %v338 = vld [vmem:[%s289 + $0x8] sm:$0xff]
        %v339 = vmul.f32 %v333, 0.17677669
        %v340 = vmul.f32 %v334, 0.17677669
        %vm341 = vcmask 261120
        %v343 = vsel %vm341, %v339, 0
        %v346 = vsel %vm341, %v340, 0
        %v349 = vsel %vm341, %v335, 0
        %v352 = vsel %vm341, %v336, 0
        %354 = vmatpush.xpose.msra.mxu0 0.0
        %355 = vmatpush.xpose.msra.mxu0 0.0
        %356 = vmatpush.xpose.msra.mxu0 0.0
        %357 = vmatpush.xpose.msra.mxu0 0.0
        %358 = vmatpush.xpose.msra.mxu0 0.0
        %359 = vmatpush.xpose.msra.mxu0 0.0
        %360 = vmatpush.xpose.msra.mxu0 0.0
        %361 = vmatpush.xpose.msra.mxu0 0.0
        %362 = vmatpush.xpose.msra.mxu0 0.0
        %363 = vmatpush.xpose.msra.mxu0 0.0
        %364 = vmatpush.xpose.msra.mxu0 0.0
        %365 = vmatpush.xpose.msra.mxu0 0.0
        %366 = vmatpush.xpose.msra.mxu0 0.0
        %367 = vmatpush.xpose.msra.mxu0 0.0
        %368 = vmatpush.xpose.msra.mxu0 %v352
        %369 = vmatpush.xpose.msra.mxu0 %v349
        %370 = vmatmul.f32.gmra.mxu0 %v343
        %v371 = vpop.f32.mrf.mxu0
        %v372 = vadd.f32 0.0, %v371
        %373 = vmatmul.f32.gmra.mxu0 %v346
        %v374 = vpop.f32.mrf.mxu0
        %v375 = vadd.f32 0.0, %v374
        %376 = vdwg.mxu0
        %vm377 = vcmask 130048
        %v378 = vsel %vm377, %v372, -inf
        %379 = vmax.xlane.f32.xlu0 %v378
        %v380 = vpop.xlane.xlu0 %379
        %v381 = vsel %vm377, %v375, -inf
        %382 = vmax.xlane.f32.xlu0 %v381
        %v383 = vpop.xlane.xlu0 %382
        %v384 = vsub.f32 %v372, %v380
        %v385 = vsub.f32 %v375, %v383
        %v386 = vmul.f32 %v384, 1.442695
        %v387 = vpow.pop %v386
        %v388 = vmul.f32 %v385, 1.442695
        %v389 = vpow.pop %v388
        %v390 = vsel %vm377, %v387, 0.0
        %391 = vadd.xlane.f32.xlu0 %v390
        %v392 = vpop.xlane.xlu0 %391
        %v393 = vsel %vm377, %v389, 0.0
        %394 = vadd.xlane.f32.xlu0 %v393
        %v395 = vpop.xlane.xlu0 %394
        %v396 = vrcp.pop %v392
        %v397 = vmul.f32 %v392, %v396
        %v398 = vsub.f32 1.0, %v397
        %v399 = vmul.f32 %v396, %v398
        %v400 = vadd.f32 %v396, %v399
        %vm401 = vweird.f32 %v392
        %vm402 = vweird.f32 %v396
        %vm403 = vmor %vm401, %vm402
        %v404 = vsel %vm403, %v396, %v400
        %v405 = vand.u32 2147483647, %v392
        %vm406 = vcmp.eq.f32.partialorder %v405, 8.507059e+37
        %v407 = vand.u32 %v392, 2147483648
        %v408 = vor.u32 1.1754944e-38, %v407
        %v409 = vsel %vm406, %v408, %v404
        %v410 = vrcp.pop %v395
        %v411 = vmul.f32 %v395, %v410
        %v412 = vsub.f32 1.0, %v411
        %v413 = vmul.f32 %v410, %v412
        %v414 = vadd.f32 %v410, %v413
        %vm415 = vweird.f32 %v395
        %vm416 = vweird.f32 %v410
        %vm417 = vmor %vm415, %vm416
        %v418 = vsel %vm417, %v410, %v414
        %v419 = vand.u32 2147483647, %v395
        %vm420 = vcmp.eq.f32.partialorder %v419, 8.507059e+37
        %v421 = vand.u32 %v395, 2147483648
        %v422 = vor.u32 1.1754944e-38, %v421
        %v423 = vsel %vm420, %v422, %v418
        %v424 = vmul.f32 %v387, %v409
        %v425 = vmul.f32 %v389, %v423
        %v427 = vsel %vm377, %v424, 0
        %v430 = vsel %vm377, %v425, 0
        %432 = vmatpush.msra.mxu0 0.0
        %433 = vmatpush.msra.mxu0 0.0
        %434 = vmatpush.msra.mxu0 0.0
        %435 = vmatpush.msra.mxu0 0.0
        %436 = vmatpush.msra.mxu0 0.0
        %437 = vmatpush.msra.mxu0 0.0
        %438 = vmatpush.msra.mxu0 0.0
        %439 = vmatpush.msra.mxu0 0.0
        %440 = vmatpush.msra.mxu0 0.0
        %441 = vmatpush.msra.mxu0 0.0
        %442 = vmatpush.msra.mxu0 0.0
        %443 = vmatpush.msra.mxu0 0.0
        %444 = vmatpush.msra.mxu0 0.0
        %445 = vmatpush.msra.mxu0 0.0
        %446 = vmatpush.msra.mxu0 %v338
        %447 = vmatpush.msra.mxu0 %v337
        %448 = vmatmul.f32.gmra.mxu0 %v427
        %v449 = vpop.f32.mrf.mxu0
        %v450 = vadd.f32 0.0, %v449
        %451 = vmatmul.f32.gmra.mxu0 %v430
        %v452 = vpop.f32.mrf.mxu0
        %v453 = vadd.f32 0.0, %v452
        %454 = vdwg.mxu0
        %455 = vst.msk [vmem:[%s322] sm:$0xff] %vm341, %v450
        %456 = vst.msk [vmem:[%s322 + $0x8] sm:$0xff] %vm341, %v453
        %457 = vst.msk [vmem:[%s329] sm:$0xff] %vm377, %v424
        %458 = vst.msk [vmem:[%s329 + $0x8] sm:$0xff] %vm377, %v425
        %s459 = sand.u32 %s130, 1
        %s460 = scalar_lea.sflag [#allocation4], %s459
        %s461 = sand.u32 %s130, 1
        %s462 = smul.addr %s461, 16
        %s463 = scalar_lea.vmem [#allocation8], %s462
        %s464 = sand.u32 %s158, 1
        %s465 = scalar_lea.sflag [#allocation10], %s464
        %s466 = sand.u32 %s158, 1
        %s467 = smul.addr %s466, 16
        %s468 = scalar_lea.vmem [#allocation9], %s467
        // Predicated region
        $region45: #{tpu_custom_call.1} parent=31 // pred_check
          %p469 = pneg %p140
        $region46: #{tpu_custom_call.1} parent=31 // pred_check_branch
          %471 = sbr.rel (%p469) target = $region48
        $region47: #{tpu_custom_call.1} parent=31 // pred_region
          %s472 = smul.u32 2, %s33
          %474 = vsyncadd %s460, 0
          %s475 = smul.addr %s32, 2
          %s476 = sadd.s32 %s472, %s475
          %s477 = smul.addr %s476, 8
          %s478 = scalar_lea.hbm %s3, %s477
          %s479 = sshll.u32 %s463, 4
          %s480 = int_to_ptr.vmem [resolvable:$true] %s479
          %s481 = sshll.u32 %s478, 4
          %s482 = int_to_ptr.hbm [resolvable:$true] %s481
          %487 = dma.vmem_to_hbm [thread:$0]  %s480, 256, %s482, %s460, 128, 128, 8
        $region48: #{tpu_custom_call.1} parent=31 // pred_fallthru
          _
        // Predicated region
        $region49: #{tpu_custom_call.1} parent=31 // pred_check
          %p488 = pneg %p168
        $region50: #{tpu_custom_call.1} parent=31 // pred_check_branch
          %490 = sbr.rel (%p488) target = $region52
        $region51: #{tpu_custom_call.1} parent=31 // pred_region
          %s491 = smul.u32 2, %s33
          %493 = vsyncadd %s465, 0
          %s494 = smul.addr %s32, 2
          %s495 = sadd.s32 %s491, %s494
          %s496 = smul.addr %s495, 8
          %s497 = scalar_lea.hbm %s4, %s496
          %s498 = sshll.u32 %s468, 4
          %s499 = int_to_ptr.vmem [resolvable:$true] %s498
          %s500 = sshll.u32 %s497, 4
          %s501 = int_to_ptr.hbm [resolvable:$true] %s500
          %506 = dma.vmem_to_hbm [thread:$0]  %s499, 256, %s501, %s465, 128, 128, 8
        $region52: #{tpu_custom_call.1} parent=31 // pred_fallthru
          _
      $region32: #{tpu_custom_call.1} parent=5 // pred_fallthru
        _
      %p507 = scmp.le.s32.totalorder 2, %s23
      // Predicated region
      $region53: #{tpu_custom_call.1} parent=5 // pred_check
        %p508 = pneg %p507
      $region54: #{tpu_custom_call.1} parent=5 // pred_check_branch
        %510 = sbr.rel (%p508) target = $region56
      $region55: #{tpu_custom_call.1} parent=5 // pred_region
        %s511 = ssub.s32 %s23, 2
        // Predicated region
        $region57: #{tpu_custom_call.1} parent=55 // pred_check
          %p512 = pneg %p146
        $region58: #{tpu_custom_call.1} parent=55 // pred_check_branch
          %514 = sbr.rel (%p512) target = $region60
        $region59: #{tpu_custom_call.1} parent=55 // pred_region
          %s515 = sand.u32 %s131, 1
          %s516 = scalar_lea.sflag [#allocation4], %s515
          %s517 = sand.u32 %s131, 1
          %s518 = smul.addr %s517, 16
          %s519 = scalar_lea.vmem [#allocation8], %s518
          %521 = dma.done %s516, 256
        $region60: #{tpu_custom_call.1} parent=55 // pred_fallthru
          _
        // Predicated region
        $region61: #{tpu_custom_call.1} parent=55 // pred_check
          %p522 = pneg %p174
        $region62: #{tpu_custom_call.1} parent=55 // pred_check_branch
          %524 = sbr.rel (%p522) target = $region64
        $region63: #{tpu_custom_call.1} parent=55 // pred_region
          %s525 = sand.u32 %s159, 1
          %s526 = scalar_lea.sflag [#allocation10], %s525
          %s527 = sand.u32 %s159, 1
          %s528 = smul.addr %s527, 16
          %s529 = scalar_lea.vmem [#allocation9], %s528
          %531 = dma.done %s526, 256
        $region64: #{tpu_custom_call.1} parent=55 // pred_fallthru
          _
      $region56: #{tpu_custom_call.1} parent=5 // pred_fallthru
        _
    $region6: #{tpu_custom_call.1} parent=1 // loop_footer
      %s27 = sadd.s32 1, %s23
    $region7: #{tpu_custom_call.1} parent=1 // loop_footer_branch
      %22 = sbr.rel target = $region3
    $region8: #{tpu_custom_call.1} parent=1 // loop_exit
      _
    %532 = vsyncpa [#allocation3], 1
    %s533 = scalar_lea.sflag [#allocation3], 1
    %534 = vsyncpa %s533, 1
    %535 = vsyncpa [#allocation6], 1
    %s536 = scalar_lea.sflag [#allocation6], 1
    %537 = vsyncpa %s536, 1
    %538 = vsyncpa [#allocation4], 1
    %s539 = scalar_lea.sflag [#allocation4], 1
    %540 = vsyncpa %s539, 1
    %541 = vsyncpa [#allocation10], 1
    %s542 = scalar_lea.sflag [#allocation10], 1
    %543 = vsyncpa %s542, 1

</llo_original>
